<compile_context>
chip_gen: v5e
topology: v5e:2x2
jax: 0.10.0
libtpu: 0.0.40
codegen_flags: <defaults>
</compile_context>

<pallas_src>
import jax
import jax.numpy as jnp
from jax.experimental import pallas as pl
from jax.experimental.pallas import tpu as pltpu

EPS = 1e-5
H1, H2, H3 = 32, 16, 8
LANES = 128

# Packed slab layout (rows; every section is 8-aligned and full 128 lanes wide):
#   rows 0..7   : vector rows (g1, be1, g2, be2, g3, be3, w4_row, b4_row)
#   rows 8..135 : W1 section (rows 8..8+Din-1 hold W1, cols 0..31; rest 0)
#   rows 136..263: W2 section (rows 136..167 hold W2, cols 0..15; rest 0)
#   rows 264..391: W3 section (rows 264..279 hold W3, cols 0..7;  rest 0)
R_W1 = 8
R_W2 = R_W1 + LANES      # 136
R_W3 = R_W2 + LANES      # 264
N_ROWS = R_W3 + LANES    # 392


def _bn_relu(h, gamma, beta):
    # BatchNorm1d training-mode batch stats; two-pass (stable) variance;
    # gamma folded into the rsqrt scale; affine; ReLU.
    mu = jnp.mean(h, axis=0, keepdims=True)
    d = h - mu
    var = jnp.mean(d * d, axis=0, keepdims=True)
    scale = gamma * jax.lax.rsqrt(var + EPS)   # (1,128) row; overlaps EUP latency
    return jnp.maximum(d * scale + beta, 0.0)


def _make_kernel(d_cat, d_num):
    def kernel(cat_ref, num_ref, slab_ref, out_ref, x_scr):
        # Fuse torch.cat: pack x = [cat | num | 0...] into a zero-padded
        # (B, 128) scratch so fc1 is a single aligned MXU matmul.  The padded
        # lanes multiply zero weight rows, so they contribute nothing (zero-init
        # guards against stale-VMEM NaN/Inf * 0).
        x_scr[...] = jnp.zeros_like(x_scr)
        x_scr[:, 0:d_cat] = cat_ref[...]
        x_scr[:, d_cat:d_cat + d_num] = num_ref[...]
        x = x_scr[...]

        # fc1 (+BN+ReLU); bias elided (cancels in batch-stat BN).
        h = jnp.dot(x, slab_ref[R_W1:R_W2, :], preferred_element_type=jnp.float32)
        h = _bn_relu(h, slab_ref[0:1, :], slab_ref[1:2, :])

        # fc2 (+BN+ReLU), bias elided.
        h = jnp.dot(h, slab_ref[R_W2:R_W3, :], preferred_element_type=jnp.float32)
        h = _bn_relu(h, slab_ref[2:3, :], slab_ref[3:4, :])

        # fc3 (+BN+ReLU), bias elided.
        h = jnp.dot(h, slab_ref[R_W3:N_ROWS, :], preferred_element_type=jnp.float32)
        h = _bn_relu(h, slab_ref[4:5, :], slab_ref[5:6, :])

        # fc4 (out_features=1): VPU multiply + XLU lane reduction; b4 is a
        # lane-replicated row so the epilogue stays full-lane.
        w4_row = slab_ref[6:7, :]                                   # (1,128)
        b4_row = slab_ref[7:8, :]                                   # (1,128)
        y = jnp.sum(h * w4_row, axis=-1, keepdims=True)             # (B,1)
        out_ref[...] = jnp.maximum(
            jnp.broadcast_to(y, out_ref.shape) + b4_row, 0.0)       # lane-dense store

    return kernel


def pack_params(params, d_cat, d_num):
    """Pack all parameters into ONE contiguous, fully lane/sublane-aligned slab."""
    din = d_cat + d_num
    slab = jnp.zeros((N_ROWS, LANES), jnp.float32)
    slab = slab.at[0, :H1].set(params["g1"].reshape(-1))
    slab = slab.at[1, :H1].set(params["be1"].reshape(-1))
    slab = slab.at[2, :H2].set(params["g2"].reshape(-1))
    slab = slab.at[3, :H2].set(params["be2"].reshape(-1))
    slab = slab.at[4, :H3].set(params["g3"].reshape(-1))
    slab = slab.at[5, :H3].set(params["be3"].reshape(-1))
    slab = slab.at[6, :H3].set(params["w4"].reshape(-1))     # w4 as a row
    slab = slab.at[7, :].set(params["b4"][0, 0])             # b4 replicated across lanes
    slab = slab.at[R_W1:R_W1 + din, :H1].set(params["w1"])   # rows in [cat|num] order
    slab = slab.at[R_W2:R_W2 + H1, :H2].set(params["w2"])
    slab = slab.at[R_W3:R_W3 + H2, :H3].set(params["w3"])
    return slab


@jax.jit
def regression_forward(cat, num, slab):
    """cat: (B, D_CAT), num: (B, D_NUM) float32; slab from pack_params."""
    B = cat.shape[0]
    d_cat, d_num = cat.shape[1], num.shape[1]
    assert d_cat + d_num <= LANES, "input_dim must fit in one lane group"
    kernel = _make_kernel(d_cat, d_num)
    vmem = pl.BlockSpec(memory_space=pltpu.MemorySpace.VMEM)
    out_pad = pl.pallas_call(
        kernel,
        out_shape=jax.ShapeDtypeStruct((B, LANES), jnp.float32),
        in_specs=[vmem, vmem, vmem],
        out_specs=vmem,
        scratch_shapes=[pltpu.VMEM((B, LANES), jnp.float32)],
    )(cat, num, slab)
    return out_pad[:, :1]


def init_params(key, input_dim):
    dims = [(input_dim, H1), (H1, H2), (H2, H3), (H3, 1)]
    params = {}
    keys = jax.random.split(key, 8)
    for i, (din, dout) in enumerate(dims, start=1):
        bound = 1.0 / jnp.sqrt(din)
        params[f"w{i}"] = jax.random.uniform(
            keys[2 * (i - 1)], (din, dout), jnp.float32, -bound, bound)
        params[f"b{i}"] = jax.random.uniform(
            keys[2 * (i - 1) + 1], (1, dout), jnp.float32, -bound, bound)
    # BatchNorm affine params (slightly off-identity so the affine is exercised).
    for i, dout in zip((1, 2, 3), (H1, H2, H3)):
        params[f"g{i}"] = 1.0 + 0.01 * jnp.arange(dout, dtype=jnp.float32).reshape(1, dout)
        params[f"be{i}"] = 0.05 * jnp.arange(dout, dtype=jnp.float32).reshape(1, dout)
    return params


def reference_forward(cat, num, p):
    """Plain-JAX reference matching the PyTorch module exactly (biases included)."""
    def bn_relu(h, g, b):
        mu = jnp.mean(h, axis=0, keepdims=True)
        var = jnp.mean((h - mu) ** 2, axis=0, keepdims=True)
        return jnp.maximum((h - mu) / jnp.sqrt(var + EPS) * g + b, 0.0)

    x = jnp.concatenate([cat, num], axis=1)
    h = x @ p["w1"] + p["b1"]
    h = bn_relu(h, p["g1"], p["be1"])
    h = h @ p["w2"] + p["b2"]
    h = bn_relu(h, p["g2"], p["be2"])
    h = h @ p["w3"] + p["b3"]
    h = bn_relu(h, p["g3"], p["be3"])
    h = h @ p["w4"] + p["b4"]
    return jnp.maximum(h, 0.0)


if __name__ == "__main__":
    key = jax.random.PRNGKey(0)
    k_cat, k_num, k_param = jax.random.split(key, 3)

    B, D_CAT, D_NUM = 8, 12, 20          # input_dim = 32
    categorical_features = jax.random.normal(k_cat, (B, D_CAT), jnp.float32)
    numerical_features = jax.random.normal(k_num, (B, D_NUM), jnp.float32)

    params = init_params(k_param, D_CAT + D_NUM)
    slab = pack_params(params, D_CAT, D_NUM)

    out = regression_forward(categorical_features, numerical_features, slab)
    out = jax.block_until_ready(out)

    ref = reference_forward(categorical_features, numerical_features, params)
    assert out.shape == (B, 1)
    assert jnp.allclose(out, ref, atol=1e-4, rtol=1e-4), "mismatch vs reference"

    print("KERNEL_OK")
</pallas_src>

<mosaic_0001>
module attributes {stable_mosaic.version = 11 : i64} {
  func.func @kernel(%arg0: memref<8x12xf32, #tpu.memory_space<vmem>>, %arg1: memref<8x20xf32, #tpu.memory_space<vmem>>, %arg2: memref<392x128xf32, #tpu.memory_space<vmem>>, %arg3: memref<8x128xf32, #tpu.memory_space<vmem>>, %arg4: memref<8x128xf32, #tpu.memory_space<vmem>>) attributes {dimension_semantics = [], scalar_prefetch = 0 : i64, scratch_operands = 1 : i64, tpu.core_type = #tpu.core_type<tc>} {
    %cst = arith.constant 0.000000e+00 : f32
    %0 = vector.broadcast %cst : f32 to vector<8x128xf32>
    %c0 = arith.constant 0 : index
    %c0_0 = arith.constant 0 : index
    %1 = vector.load %arg4[%c0, %c0_0] : memref<8x128xf32, #tpu.memory_space<vmem>>, vector<8x128xf32>
    tpu.vector_store %arg4[%c0, %c0_0], %0 {strides = array<i32>} : memref<8x128xf32, #tpu.memory_space<vmem>>, vector<8x128xf32>,
    %c0_1 = arith.constant 0 : index
    %c0_2 = arith.constant 0 : index
    %2 = vector.load %arg0[%c0_1, %c0_2] : memref<8x12xf32, #tpu.memory_space<vmem>>, vector<8x12xf32>
    %c0_3 = arith.constant 0 : index
    %c0_4 = arith.constant 0 : index
    %3 = vector.load %arg4[%c0_3, %c0_4] : memref<8x128xf32, #tpu.memory_space<vmem>>, vector<8x12xf32>
    tpu.vector_store %arg4[%c0_3, %c0_4], %2 {strides = array<i32>} : memref<8x128xf32, #tpu.memory_space<vmem>>, vector<8x12xf32>,
    %c0_5 = arith.constant 0 : index
    %c0_6 = arith.constant 0 : index
    %4 = vector.load %arg1[%c0_5, %c0_6] : memref<8x20xf32, #tpu.memory_space<vmem>>, vector<8x20xf32>
    %c0_7 = arith.constant 0 : index
    %c12 = arith.constant 12 : index
    %5 = vector.load %arg4[%c0_7, %c12] : memref<8x128xf32, #tpu.memory_space<vmem>>, vector<8x20xf32>
    tpu.vector_store %arg4[%c0_7, %c12], %4 {strides = array<i32>} : memref<8x128xf32, #tpu.memory_space<vmem>>, vector<8x20xf32>,
    %c0_8 = arith.constant 0 : index
    %c0_9 = arith.constant 0 : index
    %6 = vector.load %arg4[%c0_8, %c0_9] : memref<8x128xf32, #tpu.memory_space<vmem>>, vector<8x128xf32>
    %c8 = arith.constant 8 : index
    %c0_10 = arith.constant 0 : index
    %7 = vector.load %arg2[%c8, %c0_10] : memref<392x128xf32, #tpu.memory_space<vmem>>, vector<128x128xf32>
    %cst_11 = arith.constant dense<0.000000e+00> : vector<8x128xf32>
    %8 = tpu.matmul %6, %7, %cst_11 {dimension_numbers = #tpu.dot_dimension_numbers<[1], [0], [0], [1], [0, 0, 1, 1], [], []>} : vector<8x128xf32>, vector<128x128xf32>, vector<8x128xf32> -> vector<8x128xf32>
    %c0_12 = arith.constant 0 : index
    %c0_13 = arith.constant 0 : index
    %9 = vector.load %arg2[%c0_12, %c0_13] : memref<392x128xf32, #tpu.memory_space<vmem>>, vector<1x128xf32>
    %c1 = arith.constant 1 : index
    %c0_14 = arith.constant 0 : index
    %10 = vector.load %arg2[%c1, %c0_14] : memref<392x128xf32, #tpu.memory_space<vmem>>, vector<1x128xf32>
    %cst_15 = arith.constant dense<0.000000e+00> : vector<128xf32>
    %11 = vector.multi_reduction <add>, %8, %cst_15 [0] : vector<8x128xf32> to vector<128xf32>
    %12 = vector.shape_cast %11 : vector<128xf32> to vector<1x128xf32>
    %cst_16 = arith.constant 8.000000e+00 : f32
    %13 = vector.broadcast %cst_16 : f32 to vector<1x128xf32>
    %14 = arith.divf %12, %13 : vector<1x128xf32>
    %15 = vector.broadcast %14 : vector<1x128xf32> to vector<8x128xf32>
    %16 = arith.subf %8, %15 : vector<8x128xf32>
    %17 = arith.mulf %16, %16 : vector<8x128xf32>
    %cst_17 = arith.constant dense<0.000000e+00> : vector<128xf32>
    %18 = vector.multi_reduction <add>, %17, %cst_17 [0] : vector<8x128xf32> to vector<128xf32>
    %19 = vector.shape_cast %18 : vector<128xf32> to vector<1x128xf32>
    %cst_18 = arith.constant 8.000000e+00 : f32
    %20 = vector.broadcast %cst_18 : f32 to vector<1x128xf32>
    %21 = arith.divf %19, %20 : vector<1x128xf32>
    %cst_19 = arith.constant 9.99999974E-6 : f32
    %22 = vector.broadcast %cst_19 : f32 to vector<1x128xf32>
    %23 = arith.addf %21, %22 : vector<1x128xf32>
    %24 = math.rsqrt %23 : vector<1x128xf32>
    %25 = arith.mulf %9, %24 : vector<1x128xf32>
    %26 = vector.broadcast %25 : vector<1x128xf32> to vector<8x128xf32>
    %27 = arith.mulf %16, %26 : vector<8x128xf32>
    %28 = vector.broadcast %10 : vector<1x128xf32> to vector<8x128xf32>
    %29 = arith.addf %27, %28 : vector<8x128xf32>
    %cst_20 = arith.constant 0.000000e+00 : f32
    %30 = vector.broadcast %cst_20 : f32 to vector<8x128xf32>
    %31 = arith.maximumf %29, %30 : vector<8x128xf32>
    %c136 = arith.constant 136 : index
    %c0_21 = arith.constant 0 : index
    %32 = vector.load %arg2[%c136, %c0_21] : memref<392x128xf32, #tpu.memory_space<vmem>>, vector<128x128xf32>
    %cst_22 = arith.constant dense<0.000000e+00> : vector<8x128xf32>
    %33 = tpu.matmul %31, %32, %cst_22 {dimension_numbers = #tpu.dot_dimension_numbers<[1], [0], [0], [1], [0, 0, 1, 1], [], []>} : vector<8x128xf32>, vector<128x128xf32>, vector<8x128xf32> -> vector<8x128xf32>
    %c2 = arith.constant 2 : index
    %c0_23 = arith.constant 0 : index
    %34 = vector.load %arg2[%c2, %c0_23] : memref<392x128xf32, #tpu.memory_space<vmem>>, vector<1x128xf32>
    %c3 = arith.constant 3 : index
    %c0_24 = arith.constant 0 : index
    %35 = vector.load %arg2[%c3, %c0_24] : memref<392x128xf32, #tpu.memory_space<vmem>>, vector<1x128xf32>
    %cst_25 = arith.constant dense<0.000000e+00> : vector<128xf32>
    %36 = vector.multi_reduction <add>, %33, %cst_25 [0] : vector<8x128xf32> to vector<128xf32>
    %37 = vector.shape_cast %36 : vector<128xf32> to vector<1x128xf32>
    %cst_26 = arith.constant 8.000000e+00 : f32
    %38 = vector.broadcast %cst_26 : f32 to vector<1x128xf32>
    %39 = arith.divf %37, %38 : vector<1x128xf32>
    %40 = vector.broadcast %39 : vector<1x128xf32> to vector<8x128xf32>
    %41 = arith.subf %33, %40 : vector<8x128xf32>
    %42 = arith.mulf %41, %41 : vector<8x128xf32>
    %cst_27 = arith.constant dense<0.000000e+00> : vector<128xf32>
    %43 = vector.multi_reduction <add>, %42, %cst_27 [0] : vector<8x128xf32> to vector<128xf32>
    %44 = vector.shape_cast %43 : vector<128xf32> to vector<1x128xf32>
    %cst_28 = arith.constant 8.000000e+00 : f32
    %45 = vector.broadcast %cst_28 : f32 to vector<1x128xf32>
    %46 = arith.divf %44, %45 : vector<1x128xf32>
    %cst_29 = arith.constant 9.99999974E-6 : f32
    %47 = vector.broadcast %cst_29 : f32 to vector<1x128xf32>
    %48 = arith.addf %46, %47 : vector<1x128xf32>
    %49 = math.rsqrt %48 : vector<1x128xf32>
    %50 = arith.mulf %34, %49 : vector<1x128xf32>
    %51 = vector.broadcast %50 : vector<1x128xf32> to vector<8x128xf32>
    %52 = arith.mulf %41, %51 : vector<8x128xf32>
    %53 = vector.broadcast %35 : vector<1x128xf32> to vector<8x128xf32>
    %54 = arith.addf %52, %53 : vector<8x128xf32>
    %cst_30 = arith.constant 0.000000e+00 : f32
    %55 = vector.broadcast %cst_30 : f32 to vector<8x128xf32>
    %56 = arith.maximumf %54, %55 : vector<8x128xf32>
    %c264 = arith.constant 264 : index
    %c0_31 = arith.constant 0 : index
    %57 = vector.load %arg2[%c264, %c0_31] : memref<392x128xf32, #tpu.memory_space<vmem>>, vector<128x128xf32>
    %cst_32 = arith.constant dense<0.000000e+00> : vector<8x128xf32>
    %58 = tpu.matmul %56, %57, %cst_32 {dimension_numbers = #tpu.dot_dimension_numbers<[1], [0], [0], [1], [0, 0, 1, 1], [], []>} : vector<8x128xf32>, vector<128x128xf32>, vector<8x128xf32> -> vector<8x128xf32>
    %c4 = arith.constant 4 : index
    %c0_33 = arith.constant 0 : index
    %59 = vector.load %arg2[%c4, %c0_33] : memref<392x128xf32, #tpu.memory_space<vmem>>, vector<1x128xf32>
    %c5 = arith.constant 5 : index
    %c0_34 = arith.constant 0 : index
    %60 = vector.load %arg2[%c5, %c0_34] : memref<392x128xf32, #tpu.memory_space<vmem>>, vector<1x128xf32>
    %cst_35 = arith.constant dense<0.000000e+00> : vector<128xf32>
    %61 = vector.multi_reduction <add>, %58, %cst_35 [0] : vector<8x128xf32> to vector<128xf32>
    %62 = vector.shape_cast %61 : vector<128xf32> to vector<1x128xf32>
    %cst_36 = arith.constant 8.000000e+00 : f32
    %63 = vector.broadcast %cst_36 : f32 to vector<1x128xf32>
    %64 = arith.divf %62, %63 : vector<1x128xf32>
    %65 = vector.broadcast %64 : vector<1x128xf32> to vector<8x128xf32>
    %66 = arith.subf %58, %65 : vector<8x128xf32>
    %67 = arith.mulf %66, %66 : vector<8x128xf32>
    %cst_37 = arith.constant dense<0.000000e+00> : vector<128xf32>
    %68 = vector.multi_reduction <add>, %67, %cst_37 [0] : vector<8x128xf32> to vector<128xf32>
    %69 = vector.shape_cast %68 : vector<128xf32> to vector<1x128xf32>
    %cst_38 = arith.constant 8.000000e+00 : f32
    %70 = vector.broadcast %cst_38 : f32 to vector<1x128xf32>
    %71 = arith.divf %69, %70 : vector<1x128xf32>
    %cst_39 = arith.constant 9.99999974E-6 : f32
    %72 = vector.broadcast %cst_39 : f32 to vector<1x128xf32>
    %73 = arith.addf %71, %72 : vector<1x128xf32>
    %74 = math.rsqrt %73 : vector<1x128xf32>
    %75 = arith.mulf %59, %74 : vector<1x128xf32>
    %76 = vector.broadcast %75 : vector<1x128xf32> to vector<8x128xf32>
    %77 = arith.mulf %66, %76 : vector<8x128xf32>
    %78 = vector.broadcast %60 : vector<1x128xf32> to vector<8x128xf32>
    %79 = arith.addf %77, %78 : vector<8x128xf32>
    %cst_40 = arith.constant 0.000000e+00 : f32
    %80 = vector.broadcast %cst_40 : f32 to vector<8x128xf32>
    %81 = arith.maximumf %79, %80 : vector<8x128xf32>
    %c6 = arith.constant 6 : index
    %c0_41 = arith.constant 0 : index
    %82 = vector.load %arg2[%c6, %c0_41] : memref<392x128xf32, #tpu.memory_space<vmem>>, vector<1x128xf32>
    %c7 = arith.constant 7 : index
    %c0_42 = arith.constant 0 : index
    %83 = vector.load %arg2[%c7, %c0_42] : memref<392x128xf32, #tpu.memory_space<vmem>>, vector<1x128xf32>
    %84 = vector.broadcast %82 : vector<1x128xf32> to vector<8x128xf32>
    %85 = arith.mulf %81, %84 : vector<8x128xf32>
    %cst_43 = arith.constant dense<0.000000e+00> : vector<8xf32>
    %86 = vector.multi_reduction <add>, %85, %cst_43 [1] : vector<8x128xf32> to vector<8xf32>
    %87 = vector.shape_cast %86 : vector<8xf32> to vector<8x1xf32>
    %88 = vector.shape_cast %87 : vector<8x1xf32> to vector<8x1xf32>
    %89 = vector.broadcast %88 : vector<8x1xf32> to vector<8x128xf32>
    %90 = vector.broadcast %83 : vector<1x128xf32> to vector<8x128xf32>
    %91 = arith.addf %89, %90 : vector<8x128xf32>
    %cst_44 = arith.constant 0.000000e+00 : f32
    %92 = vector.broadcast %cst_44 : f32 to vector<8x128xf32>
    %93 = arith.maximumf %91, %92 : vector<8x128xf32>
    %c0_45 = arith.constant 0 : index
    %c0_46 = arith.constant 0 : index
    %94 = vector.load %arg3[%c0_45, %c0_46] : memref<8x128xf32, #tpu.memory_space<vmem>>, vector<8x128xf32>
    tpu.vector_store %arg3[%c0_45, %c0_46], %93 {strides = array<i32>} : memref<8x128xf32, #tpu.memory_space<vmem>>, vector<8x128xf32>,
    return
  }
}

</mosaic_0001>

<llo_original>
// kernel: regression_forward.1
$region0: #{regression_forward.1}
  #allocation0 [shape = 'u32[]', space=smem, size = 0x4, offset = 0x4, fixed_abs, tag = 'smem constant byte address 0x4 - core index']
  #allocation1 [shape = 'u32[72,128]{1,0:T(1,128)}', space=vmem, size = 0x9000, scoped, tag = 'internal scratch']
  #allocation2 [shape = 'f32[8,128]{1,0:T(8,128)}', space=vmem, size = 0x1000, scoped, tag = 'scratch operand']
  %s0 = inlined_call_operand.hbm [shape: f32[8,12], index: 0, kind: input, shape index: {}]
  %s1 = inlined_call_operand.hbm [shape: f32[8,20], index: 1, kind: input, shape index: {}]
  %s2 = inlined_call_operand.hbm [shape: f32[392,128], index: 2, kind: input, shape index: {}]
  %s3 = inlined_call_operand.vmem [shape: f32[8,128], index: 3, kind: output, shape index: {}]
  %s4 = sld [smem:[#allocation0]]
  $region34: #{regression_forward.1} parent=0
    _
  %s6 = ssub.s32 1, %s4
  %s7 = scalar_select 0, %s6, %s4
  $region1: #{regression_forward.1} parent=0
    #allocation3 [shape = 'u8[4096]{0}', space=vmem, size = 0x1000, scoped, tag = 'input window, operand 0, single buffered']
    #allocation4 [shape = 's32[1]{0}', space=sflag, size = 0x4, scoped, tag = 'scoped memory for regression_forward.1']
    #allocation5 [shape = 'u8[4096]{0}', space=vmem, size = 0x1000, scoped, tag = 'input window, operand 1, single buffered']
    #allocation6 [shape = 's32[1]{0}', space=sflag, size = 0x4, scoped, tag = 'scoped memory for regression_forward.1']
    #allocation7 [shape = 'u8[200704]{0}', space=vmem, size = 0x31000, scoped, tag = 'input window, operand 2, single buffered']
    %8 = vsyncpa [#allocation4], 0
    %9 = vsyncpa [#allocation6], 0
    // Predicated region
    $region2: #{regression_forward.1} parent=1 // pred_check
      _
    $region3: #{regression_forward.1} parent=1 // pred_check_branch
      %11 = sbr.rel (0) target = $region5
    $region4: #{regression_forward.1} parent=1 // pred_region
      %13 = vsyncadd [#allocation4], 0
      %s15 = sshll.u32 %s0, 4
      %s16 = int_to_ptr.hbm [resolvable:$true] %s15
      %s17 = sshll.u32 [#allocation3], 4
      %s18 = int_to_ptr.vmem [resolvable:$true] %s17
      %20 = dma.hbm_to_vmem [thread:$0]  %s16, 128, %s18, [#allocation4]
    $region5: #{regression_forward.1} parent=1 // pred_fallthru
      _
    // Predicated region
    $region6: #{regression_forward.1} parent=1 // pred_check
      _
    $region7: #{regression_forward.1} parent=1 // pred_check_branch
      %22 = sbr.rel (0) target = $region9
    $region8: #{regression_forward.1} parent=1 // pred_region
      %24 = vsyncadd [#allocation6], 0
      %s26 = sshll.u32 %s1, 4
      %s27 = int_to_ptr.hbm [resolvable:$true] %s26
      %s28 = sshll.u32 [#allocation5], 4
      %s29 = int_to_ptr.vmem [resolvable:$true] %s28
      %31 = dma.hbm_to_vmem [thread:$0]  %s27, 128, %s29, [#allocation6]
    $region9: #{regression_forward.1} parent=1 // pred_fallthru
      _
    // Predicated region
    $region10: #{regression_forward.1} parent=1 // pred_check
      _
    $region11: #{regression_forward.1} parent=1 // pred_check_branch
      %33 = sbr.rel (0) target = $region13
    $region12: #{regression_forward.1} parent=1 // pred_region
      %35 = vsyncadd [#allocation6], 0
      %s36 = sshll.u32 %s2, 4
      %s37 = int_to_ptr.hbm [resolvable:$true] %s36
      %s38 = sshll.u32 [#allocation7], 4
      %s39 = int_to_ptr.vmem [resolvable:$true] %s38
      %44 = dma.hbm_to_vmem [thread:$0]  %s37, 6272, %s39, [#allocation6], 128, 128, 8
    $region13: #{regression_forward.1} parent=1 // pred_fallthru
      _
    // Predicated region
    $region14: #{regression_forward.1} parent=1 // pred_check
      _
    $region15: #{regression_forward.1} parent=1 // pred_check_branch
      %46 = sbr.rel (0) target = $region17
    $region16: #{regression_forward.1} parent=1 // pred_region
      %48 = dma.done [#allocation4], 128
    $region17: #{regression_forward.1} parent=1 // pred_fallthru
      _
    // Predicated region
    $region18: #{regression_forward.1} parent=1 // pred_check
      _
    $region19: #{regression_forward.1} parent=1 // pred_check_branch
      %50 = sbr.rel (0) target = $region21
    $region20: #{regression_forward.1} parent=1 // pred_region
      %52 = dma.done [#allocation6], 128
    $region21: #{regression_forward.1} parent=1 // pred_fallthru
      _
    // Predicated region
    $region22: #{regression_forward.1} parent=1 // pred_check
      _
    $region23: #{regression_forward.1} parent=1 // pred_check_branch
      %54 = sbr.rel (0) target = $region25
    $region24: #{regression_forward.1} parent=1 // pred_region
      %56 = dma.done [#allocation6], 6272
    $region25: #{regression_forward.1} parent=1 // pred_fallthru
      _
    %57 = vst [vmem:[#allocation2] sm:$0xff] 0.0
    %v58 = vld [vmem:[#allocation3] sm:$0xff]
    %vm59 = vcmask 97280
    %60 = vst.msk [vmem:[#allocation2] sm:$0xff] %vm59, %v58
    %v61 = vld [vmem:[#allocation5] sm:$0xff]
    %63 = vrot.lane.b32.xlu0 %v61, 12
    %v64 = vpop.permute.xlu0 %63
    %vm66 = vcmask 261216
    %67 = vst.msk [vmem:[#allocation2] sm:$0xff] %vm66, %v64
    %v68 = vld [vmem:[#allocation2] sm:$0xff]
    %v69 = vld [vmem:[#allocation7 + $0x8] sm:$0xff]
    %v70 = vld [vmem:[#allocation7 + $0x10] sm:$0xff]
    %v71 = vld [vmem:[#allocation7 + $0x18] sm:$0xff]
    %v72 = vld [vmem:[#allocation7 + $0x20] sm:$0xff]
    %v73 = vld [vmem:[#allocation7 + $0x28] sm:$0xff]
    %v74 = vld [vmem:[#allocation7 + $0x30] sm:$0xff]
    %v75 = vld [vmem:[#allocation7 + $0x38] sm:$0xff]
    %v76 = vld [vmem:[#allocation7 + $0x40] sm:$0xff]
    %v77 = vld [vmem:[#allocation7 + $0x48] sm:$0xff]
    %v78 = vld [vmem:[#allocation7 + $0x50] sm:$0xff]
    %v79 = vld [vmem:[#allocation7 + $0x58] sm:$0xff]
    %v80 = vld [vmem:[#allocation7 + $0x60] sm:$0xff]
    %v81 = vld [vmem:[#allocation7 + $0x68] sm:$0xff]
    %v82 = vld [vmem:[#allocation7 + $0x70] sm:$0xff]
    %v83 = vld [vmem:[#allocation7 + $0x78] sm:$0xff]
    %v84 = vld [vmem:[#allocation7 + $0x80] sm:$0xff]
    %85 = vmatpush.msra.mxu0 %v84
    %86 = vmatpush.msra.mxu0 %v83
    %87 = vmatpush.msra.mxu0 %v82
    %88 = vmatpush.msra.mxu0 %v81
    %89 = vmatpush.msra.mxu0 %v80
    %90 = vmatpush.msra.mxu0 %v79
    %91 = vmatpush.msra.mxu0 %v78
    %92 = vmatpush.msra.mxu0 %v77
    %93 = vmatpush.msra.mxu0 %v76
    %94 = vmatpush.msra.mxu0 %v75
    %95 = vmatpush.msra.mxu0 %v74
    %96 = vmatpush.msra.mxu0 %v73
    %97 = vmatpush.msra.mxu0 %v72
    %98 = vmatpush.msra.mxu0 %v71
    %99 = vmatpush.msra.mxu0 %v70
    %100 = vmatpush.msra.mxu0 %v69
    %101 = vmatmul.f32.gmra.mxu0 %v68
    %v102 = vpop.f32.mrf.mxu0
    %v103 = vadd.f32 0.0, %v102
    %104 = vdwg.mxu0
    %v105 = vld [vmem:[#allocation7] sm:$0x1]
    %v106 = vld [vmem:[#allocation7 + $0x1] sm:$0x1]
    %v107 = vrot.slane %v103, 4
    %v108 = vadd.f32 %v103, %v107
    %v109 = vrot.slane %v108, 2
    %v110 = vadd.f32 %v108, %v109
    %v111 = vrot.slane %v110, 1
    %v112 = vadd.f32 %v110, %v111
    %v113 = vrcp.pop 8.0
    %v114 = vmul.f32 8.0, %v113
    %v115 = vsub.f32 1.0, %v114
    %v116 = vmul.f32 %v113, %v115
    %v117 = vadd.f32 %v113, %v116
    %vm118 = vweird.f32 %v113
    %v119 = vsel %vm118, %v113, %v117
    %v120 = vmul.f32 %v112, %v119
    %v121 = vsub.f32 %v103, %v120
    %v122 = vmul.f32 %v121, %v121
    %v123 = vrot.slane %v122, 4
    %v124 = vadd.f32 %v122, %v123
    %v125 = vrot.slane %v124, 2
    %v126 = vadd.f32 %v124, %v125
    %v127 = vrot.slane %v126, 1
    %v128 = vadd.f32 %v126, %v127
    %v129 = vmul.f32 %v128, %v119
    %v130 = vadd.f32 %v129, 1e-05
    %v131 = vrsqrt.pop %v130
    %v132 = vmul.f32 %v131, %v130
    %v133 = vmul.f32 %v132, %v131
    %v134 = vmul.f32 0.5, %v133
    %v135 = vsub.f32 1.5, %v134
    %v136 = vmul.f32 %v131, %v135
    %vm137 = vweird.f32 %v130
    %vm138 = vweird.f32 %v131
    %vm139 = vmor %vm137, %vm138
    %v140 = vsel %vm139, %v131, %v136
    %v141 = vmul.f32 %v105, %v140
    %v142 = vperm.slane %v141, 0
    %v143 = vmul.f32 %v121, %v142
    %v144 = vperm.slane %v106, 0
    %v145 = vadd.f32 %v143, %v144
    %v146 = vmax.f32 %v145, 0.0
    %v147 = vld [vmem:[#allocation7 + $0x88] sm:$0xff]
    %v148 = vld [vmem:[#allocation7 + $0x90] sm:$0xff]
    %v149 = vld [vmem:[#allocation7 + $0x98] sm:$0xff]
    %v150 = vld [vmem:[#allocation7 + $0xa0] sm:$0xff]
    %v151 = vld [vmem:[#allocation7 + $0xa8] sm:$0xff]
    %v152 = vld [vmem:[#allocation7 + $0xb0] sm:$0xff]
    %v153 = vld [vmem:[#allocation7 + $0xb8] sm:$0xff]
    %v154 = vld [vmem:[#allocation7 + $0xc0] sm:$0xff]
    %v155 = vld [vmem:[#allocation7 + $0xc8] sm:$0xff]
    %v156 = vld [vmem:[#allocation7 + $0xd0] sm:$0xff]
    %v157 = vld [vmem:[#allocation7 + $0xd8] sm:$0xff]
    %v158 = vld [vmem:[#allocation7 + $0xe0] sm:$0xff]
    %v159 = vld [vmem:[#allocation7 + $0xe8] sm:$0xff]
    %v160 = vld [vmem:[#allocation7 + $0xf0] sm:$0xff]
    %v161 = vld [vmem:[#allocation7 + $0xf8] sm:$0xff]
    %v162 = vld [vmem:[#allocation7 + $0x100] sm:$0xff]
    %163 = vmatpush.msra.mxu0 %v162
    %164 = vmatpush.msra.mxu0 %v161
    %165 = vmatpush.msra.mxu0 %v160
    %166 = vmatpush.msra.mxu0 %v159
    %167 = vmatpush.msra.mxu0 %v158
    %168 = vmatpush.msra.mxu0 %v157
    %169 = vmatpush.msra.mxu0 %v156
    %170 = vmatpush.msra.mxu0 %v155
    %171 = vmatpush.msra.mxu0 %v154
    %172 = vmatpush.msra.mxu0 %v153
    %173 = vmatpush.msra.mxu0 %v152
    %174 = vmatpush.msra.mxu0 %v151
    %175 = vmatpush.msra.mxu0 %v150
    %176 = vmatpush.msra.mxu0 %v149
    %177 = vmatpush.msra.mxu0 %v148
    %178 = vmatpush.msra.mxu0 %v147
    %179 = vmatmul.f32.gmra.mxu0 %v146
    %v180 = vpop.f32.mrf.mxu0
    %v181 = vadd.f32 0.0, %v180
    %182 = vdwg.mxu0
    %v183 = vld [vmem:[#allocation7 + $0x2] sm:$0x1]
    %v184 = vld [vmem:[#allocation7 + $0x3] sm:$0x1]
    %v185 = vrot.slane %v181, 4
    %v186 = vadd.f32 %v181, %v185
    %v187 = vrot.slane %v186, 2
    %v188 = vadd.f32 %v186, %v187
    %v189 = vrot.slane %v188, 1
    %v190 = vadd.f32 %v188, %v189
    %v191 = vmul.f32 %v190, %v119
    %v192 = vsub.f32 %v181, %v191
    %v193 = vmul.f32 %v192, %v192
    %v194 = vrot.slane %v193, 4
    %v195 = vadd.f32 %v193, %v194
    %v196 = vrot.slane %v195, 2
    %v197 = vadd.f32 %v195, %v196
    %v198 = vrot.slane %v197, 1
    %v199 = vadd.f32 %v197, %v198
    %v200 = vmul.f32 %v199, %v119
    %v201 = vadd.f32 %v200, 1e-05
    %v202 = vrsqrt.pop %v201
    %v203 = vmul.f32 %v202, %v201
    %v204 = vmul.f32 %v203, %v202
    %v205 = vmul.f32 0.5, %v204
    %v206 = vsub.f32 1.5, %v205
    %v207 = vmul.f32 %v202, %v206
    %vm208 = vweird.f32 %v201
    %vm209 = vweird.f32 %v202
    %vm210 = vmor %vm208, %vm209
    %v211 = vsel %vm210, %v202, %v207
    %v212 = vmul.f32 %v183, %v211
    %v213 = vperm.slane %v212, 0
    %v214 = vmul.f32 %v192, %v213
    %v215 = vperm.slane %v184, 0
    %v216 = vadd.f32 %v214, %v215
    %v217 = vmax.f32 %v216, 0.0
    %v218 = vld [vmem:[#allocation7 + $0x108] sm:$0xff]
    %v219 = vld [vmem:[#allocation7 + $0x110] sm:$0xff]
    %v220 = vld [vmem:[#allocation7 + $0x118] sm:$0xff]
    %v221 = vld [vmem:[#allocation7 + $0x120] sm:$0xff]
    %v222 = vld [vmem:[#allocation7 + $0x128] sm:$0xff]
    %v223 = vld [vmem:[#allocation7 + $0x130] sm:$0xff]
    %v224 = vld [vmem:[#allocation7 + $0x138] sm:$0xff]
    %v225 = vld [vmem:[#allocation7 + $0x140] sm:$0xff]
    %v226 = vld [vmem:[#allocation7 + $0x148] sm:$0xff]
    %v227 = vld [vmem:[#allocation7 + $0x150] sm:$0xff]
    %v228 = vld [vmem:[#allocation7 + $0x158] sm:$0xff]
    %v229 = vld [vmem:[#allocation7 + $0x160] sm:$0xff]
    %v230 = vld [vmem:[#allocation7 + $0x168] sm:$0xff]
    %v231 = vld [vmem:[#allocation7 + $0x170] sm:$0xff]
    %v232 = vld [vmem:[#allocation7 + $0x178] sm:$0xff]
    %v233 = vld [vmem:[#allocation7 + $0x180] sm:$0xff]
    %234 = vmatpush.msra.mxu0 %v233
    %235 = vmatpush.msra.mxu0 %v232
    %236 = vmatpush.msra.mxu0 %v231
    %237 = vmatpush.msra.mxu0 %v230
    %238 = vmatpush.msra.mxu0 %v229
    %239 = vmatpush.msra.mxu0 %v228
    %240 = vmatpush.msra.mxu0 %v227
    %241 = vmatpush.msra.mxu0 %v226
    %242 = vmatpush.msra.mxu0 %v225
    %243 = vmatpush.msra.mxu0 %v224
    %244 = vmatpush.msra.mxu0 %v223
    %245 = vmatpush.msra.mxu0 %v222
    %246 = vmatpush.msra.mxu0 %v221
    %247 = vmatpush.msra.mxu0 %v220
    %248 = vmatpush.msra.mxu0 %v219
    %249 = vmatpush.msra.mxu0 %v218
    %250 = vmatmul.f32.gmra.mxu0 %v217
    %v251 = vpop.f32.mrf.mxu0
    %v252 = vadd.f32 0.0, %v251
    %253 = vdwg.mxu0
    %v254 = vld [vmem:[#allocation7 + $0x4] sm:$0x1]
    %v255 = vld [vmem:[#allocation7 + $0x5] sm:$0x1]
    %v256 = vrot.slane %v252, 4
    %v257 = vadd.f32 %v252, %v256
    %v258 = vrot.slane %v257, 2
    %v259 = vadd.f32 %v257, %v258
    %v260 = vrot.slane %v259, 1
    %v261 = vadd.f32 %v259, %v260
    %v262 = vmul.f32 %v261, %v119
    %v263 = vsub.f32 %v252, %v262
    %v264 = vmul.f32 %v263, %v263
    %v265 = vrot.slane %v264, 4
    %v266 = vadd.f32 %v264, %v265
    %v267 = vrot.slane %v266, 2
    %v268 = vadd.f32 %v266, %v267
    %v269 = vrot.slane %v268, 1
    %v270 = vadd.f32 %v268, %v269
    %v271 = vmul.f32 %v270, %v119
    %v272 = vadd.f32 %v271, 1e-05
    %v273 = vrsqrt.pop %v272
    %v274 = vmul.f32 %v273, %v272
    %v275 = vmul.f32 %v274, %v273
    %v276 = vmul.f32 0.5, %v275
    %v277 = vsub.f32 1.5, %v276
    %v278 = vmul.f32 %v273, %v277
    %vm279 = vweird.f32 %v272
    %vm280 = vweird.f32 %v273
    %vm281 = vmor %vm279, %vm280
    %v282 = vsel %vm281, %v273, %v278
    %v283 = vmul.f32 %v254, %v282
    %v284 = vperm.slane %v283, 0
    %v285 = vmul.f32 %v263, %v284
    %v286 = vperm.slane %v255, 0
    %v287 = vadd.f32 %v285, %v286
    %v288 = vmax.f32 %v287, 0.0
    %v289 = vld [vmem:[#allocation7 + $0x6] sm:$0x1]
    %v290 = vld [vmem:[#allocation7 + $0x7] sm:$0x1]
    %v291 = vperm.slane %v289, 0
    %v292 = vmul.f32 %v288, %v291
    %293 = vadd.xlane.f32.xlu0 %v292
    %v294 = vpop.xlane.xlu0 %293
    %v295 = vperm.slane %v290, 0
    %v296 = vadd.f32 %v294, %v295
    %v297 = vmax.f32 %v296, 0.0
    %298 = vst [vmem:[%s3] sm:$0xff] %v297
    // Predicated region
    $region26: #{regression_forward.1} parent=1 // pred_check
      _
    $region27: #{regression_forward.1} parent=1 // pred_check_branch
      %300 = sbr.rel (0) target = $region29
    $region28: #{regression_forward.1} parent=1 // pred_region
      _
    $region29: #{regression_forward.1} parent=1 // pred_fallthru
      _
    // Predicated region
    $region30: #{regression_forward.1} parent=1 // pred_check
      _
    $region31: #{regression_forward.1} parent=1 // pred_check_branch
      %302 = sbr.rel (0) target = $region33
    $region32: #{regression_forward.1} parent=1 // pred_region
      _
    $region33: #{regression_forward.1} parent=1 // pred_fallthru
      _
    %303 = vsyncpa [#allocation4], 1
    %304 = vsyncpa [#allocation6], 1

</llo_original>
